<compile_context>
chip_gen: v5e
topology: v5e:2x2
jax: 0.10.0
libtpu: 0.0.40
codegen_flags: <defaults>
</compile_context>

<pallas_src>
import functools

import jax
import jax.numpy as jnp
from jax.experimental import pallas as pl
from jax.experimental.pallas import tpu as pltpu


def _roll_lanes(x, shift, size):
    """result[:, i] = x[:, (i + shift) % size]  (2-D x, static Python shift)."""
    t = shift % size
    if t == 0:
        return x
    if size % 128 == 0:
        # Lane rotation on the XLU (free slot relative to the vst-bound builders).
        return pltpu.roll(x, shift=size - t, axis=1)
    # Tiny / unaligned lane dims: two static lane slices + concat (always lowers).
    return jnp.concatenate([x[:, t:], x[:, :t]], axis=1)


def _halo_masks(K, pad_l, L, NbL):
    """Per-tap validity masks for 'same' padding + batch-segment boundaries."""
    pos = jax.lax.broadcasted_iota(jnp.int32, (1, NbL), 1) % L   # position inside segment
    masks = {}
    for k in range(K):
        s = k - pad_l
        if s != 0:
            masks[s] = (pos + s >= 0) & (pos + s < L)
    return masks


# ----------------------------- MXU (large-C) kernel -----------------------------

def _resblock_mxu_kernel(x_ref, w1_ref, b1_ref, w2_ref, b2_ref, o_ref,
                         col_ref, pre_ref, *, K, pad_l, L, pool, Nb):
    C = o_ref.shape[1]
    NbL = Nb * L
    L_out = L // pool
    col_dtype = col_ref.dtype

    halo = _halo_masks(K, pad_l, L, NbL)                    # hoisted, reused by both convs

    # ---- im2col for conv1: K whole-slab roll + mask ops, one aligned store each ----
    for k in range(K):
        s = k - pad_l
        xs = x_ref[0].astype(jnp.float32)                   # fresh read -> short live range
        if s != 0:
            xs = _roll_lanes(xs, s, NbL)
            xs = jnp.where(halo[s], xs, 0.0)
        col_ref[k * C:(k + 1) * C, :] = xs.astype(col_dtype)

    # ---- conv1 (+folded BN1) as ONE MXU matmul; bias + ReLU in f32 ----
    h = jnp.dot(w1_ref[...], col_ref[...], preferred_element_type=jnp.float32)
    h = jnp.maximum(h + b1_ref[...], 0.0)                   # (C, Nb*L) f32

    # ---- reuse the SAME scratch for conv2's im2col (residual comes from x_ref) ----
    col_ref[pad_l * C:(pad_l + 1) * C, :] = h.astype(col_dtype)     # center tap = h
    for k in range(K):
        s = k - pad_l
        if s == 0:
            continue
        hs = col_ref[pad_l * C:(pad_l + 1) * C, :].astype(jnp.float32)  # read back from ref
        hs = _roll_lanes(hs, s, NbL)
        hs = jnp.where(halo[s], hs, 0.0)
        col_ref[k * C:(k + 1) * C, :] = hs.astype(col_dtype)

    # ---- conv2 (+folded BN2) + residual (f32 straight from x_ref) + ReLU ----
    out = jnp.dot(w2_ref[...], col_ref[...], preferred_element_type=jnp.float32)
    out = out + b2_ref[...] + x_ref[0].astype(jnp.float32)
    pre_ref[...] = jnp.maximum(out, 0.0)                    # stage pre-pool slab in VMEM

    # ---- MaxPool1d(pool): whole-slab minor-axis max, ONE lane-dense store ----
    pooled = jnp.max(pre_ref[...].reshape(C, Nb * L_out, pool), axis=-1)
    o_ref[0] = pooled.astype(o_ref.dtype)


# ----------------------------- VPU (small-C) kernel -----------------------------

def _resblock_vpu_kernel(x_ref, w1_ref, b1_ref, w2_ref, b2_ref, o_ref,
                         pre_ref, *, K, pad_l, L, pool, Nb):
    C = o_ref.shape[1]
    NbL = Nb * L
    L_out = L // pool

    halo = _halo_masks(K, pad_l, L, NbL)

    def conv_mac(read_src, w_ref, b_ref):
        """K-tap rolled multiply-accumulate on the VPU (no im2col, all f32)."""
        wmat = w_ref[...].astype(jnp.float32)               # (C, K*C), small
        acc = jnp.broadcast_to(b_ref[...], (C, NbL))        # start from bias
        for k in range(K):
            s = k - pad_l
            src = read_src()                                # fresh (C, NbL) f32 read
            if s != 0:
                src = _roll_lanes(src, s, NbL)
                src = jnp.where(halo[s], src, 0.0)
            for c in range(C):
                col = k * C + c
                acc = acc + wmat[:, col:col + 1] * src[c:c + 1, :]
            del src
        return acc

    # conv1 (+folded BN1) + ReLU, staged in VMEM (also serves as conv2's tap source)
    h = conv_mac(lambda: x_ref[0].astype(jnp.float32), w1_ref, b1_ref)
    pre_ref[...] = jnp.maximum(h, 0.0)
    del h

    # conv2 (+folded BN2) + residual (f32 from x_ref) + ReLU
    out = conv_mac(lambda: pre_ref[...], w2_ref, b2_ref)
    out = out + x_ref[0].astype(jnp.float32)
    pre_ref[...] = jnp.maximum(out, 0.0)
    del out

    # MaxPool1d(pool): whole-slab minor-axis max, ONE lane-dense store
    pooled = jnp.max(pre_ref[...].reshape(C, Nb * L_out, pool), axis=-1)
    o_ref[0] = pooled.astype(o_ref.dtype)


# ----------------------------------- wrapper -------------------------------------

def _fold_bn(w, b, gamma, beta, mean, var, eps):
    """Fold eval-mode BatchNorm + conv bias into conv weight/bias."""
    w, b = w.astype(jnp.float32), b.astype(jnp.float32)
    gamma, beta = gamma.astype(jnp.float32), beta.astype(jnp.float32)
    mean, var = mean.astype(jnp.float32), var.astype(jnp.float32)
    scale = gamma * jax.lax.rsqrt(var + eps)                # (C,)
    return w * scale[:, None, None], (b - mean) * scale + beta


def resblock_forward(x, params, *, kernel_size, pool_size, eps=1e-5,
                     compute_dtype=jnp.bfloat16, batch_per_step=None, force_mxu=None):
    """x: (N, C, L). params: (w1,b1,g1,be1,m1,v1,w2,b2,g2,be2,m2,v2).  Eval-mode BN;
    Dropout(p=0) is the identity."""
    N, C, L = x.shape
    K = kernel_size
    # Matches torch Conv1d(padding='same') for stride 1: left = (K-1)//2, rest right.
    pad_l = (K - 1) // 2
    assert L % pool_size == 0, "MaxPool tail-drop (L % pool != 0) not implemented"
    L_out = L // pool_size

    w1, b1, g1, be1, m1, v1, w2, b2, g2, be2, m2, v2 = params
    w1f, b1f = _fold_bn(w1, b1, g1, be1, m1, v1, eps)
    w2f, b2f = _fold_bn(w2, b2, g2, be2, m2, v2, eps)

    # Strategy gate: the matmul's M dim is C, so MXU row utilization ~ C/256; for small
    # C a K-tap rolled multiply-accumulate on the VPU is faster and needs no im2col.
    use_mxu = (C >= 32) if force_mxu is None else force_mxu
    w_dtype = compute_dtype if use_mxu else jnp.float32     # v5e: keep VPU math in f32

    def mat(w):  # (C_out, C_in, K) -> (C_out, K*C_in); column k*C+c matches im2col rows
        return jnp.transpose(w, (0, 2, 1)).reshape(C, K * C).astype(w_dtype)

    def colv(b):
        return b.reshape(C, 1).astype(jnp.float32)

    # ---- batch packing along the lane axis (amortizes per-step overhead) ----
    if batch_per_step is None:
        lane_target = 2048 if (use_mxu and compute_dtype == jnp.bfloat16) else 1024
        max_nb = max(1, N // 2)                              # keep >= 2 grid steps (v7x: 2 TCs)
        best, best_aligned = 1, None
        for d in range(1, max_nb + 1):
            if N % d:
                continue
            if d * L > lane_target and d > 1:
                continue
            best = d
            if (d * L) % 128 == 0:
                best_aligned = d
        batch_per_step = best_aligned if (best_aligned is not None and
                                          2 * best_aligned >= best) else best
    Nb = batch_per_step
    assert N % Nb == 0, (N, Nb)
    G = N // Nb
    NbL = Nb * L

    # Lane-dense layout plumbing: (N, C, L) -> (G, C, Nb*L) slabs.  Free for Nb == 1.
    if Nb == 1:
        x_in = x.reshape(G, C, NbL)
    else:
        x_in = x.reshape(G, Nb, C, L).transpose(0, 2, 1, 3).reshape(G, C, NbL)

    if use_mxu:
        kernel = functools.partial(_resblock_mxu_kernel, K=K, pad_l=pad_l, L=L,
                                   pool=pool_size, Nb=Nb)
        scratch = [pltpu.VMEM((K * C, NbL), compute_dtype),   # shared im2col (both convs)
                   pltpu.VMEM((C, NbL), jnp.float32)]         # pre-pool staging
    else:
        kernel = functools.partial(_resblock_vpu_kernel, K=K, pad_l=pad_l, L=L,
                                   pool=pool_size, Nb=Nb)
        scratch = [pltpu.VMEM((C, NbL), jnp.float32)]         # h / pre-pool staging

    # Explicit VMEM budget for the chosen tile (v7x: 64 MiB physical / 32 MiB default).
    xb = x.dtype.itemsize
    wb = jnp.dtype(w_dtype).itemsize
    cb = jnp.dtype(compute_dtype).itemsize
    need = (2 * C * NbL * xb + 2 * C * Nb * L_out * xb       # double-buffered x / out blocks
            + 4 * (C * K * C) * wb + 4 * C * 4               # weights + biases
            + C * NbL * 4 + (K * C * NbL * cb if use_mxu else 0))
    vmem_limit = int(min(64 << 20, max(16 << 20, 2 * need + (1 << 20))))

    out = pl.pallas_call(
        kernel,
        out_shape=jax.ShapeDtypeStruct((G, C, Nb * L_out), x.dtype),
        grid=(G,),
        in_specs=[
            pl.BlockSpec((1, C, NbL), lambda i: (i, 0, 0)),
            # Grid-invariant weights/biases (small after BN folding).
            pl.BlockSpec((C, K * C), lambda i: (0, 0)),
            pl.BlockSpec((C, 1), lambda i: (0, 0)),
            pl.BlockSpec((C, K * C), lambda i: (0, 0)),
            pl.BlockSpec((C, 1), lambda i: (0, 0)),
        ],
        out_specs=pl.BlockSpec((1, C, Nb * L_out), lambda i: (i, 0, 0)),
        scratch_shapes=scratch,
        compiler_params=pltpu.CompilerParams(
            dimension_semantics=("parallel",),
            vmem_limit_bytes=vmem_limit),
    )(x_in, mat(w1f), colv(b1f), mat(w2f), colv(b2f))

    if Nb == 1:
        return out.reshape(N, C, L_out)
    return out.reshape(G, C, Nb, L_out).transpose(0, 2, 1, 3).reshape(N, C, L_out)


# ---------------------------------- reference ------------------------------------

def resblock_ref(x, params, *, kernel_size, pool_size, eps=1e-5):
    """Pure-JAX reference of the PyTorch forward (eval mode)."""
    w1, b1, g1, be1, m1, v1, w2, b2, g2, be2, m2, v2 = [p.astype(jnp.float32) for p in params]
    N, C, L = x.shape
    K = kernel_size
    pad_l = (K - 1) // 2
    pad_r = (K - 1) - pad_l

    def conv(h, w, b):
        hp = jnp.pad(h, ((0, 0), (0, 0), (pad_l, pad_r)))
        out = jnp.zeros((N, C, L), jnp.float32)
        for k in range(K):
            out = out + jnp.einsum('oc,ncl->nol', w[:, :, k], hp[:, :, k:k + L],
                                   precision=jax.lax.Precision.HIGHEST)
        return out + b[None, :, None]

    def bn(h, g, be, m, v):
        return (h - m[None, :, None]) * (g * jax.lax.rsqrt(v + eps))[None, :, None] + be[None, :, None]

    xf = x.astype(jnp.float32)
    h = jax.nn.relu(bn(conv(xf, w1, b1), g1, be1, m1, v1))
    out = bn(conv(h, w2, b2), g2, be2, m2, v2) + xf
    out = jax.nn.relu(out)
    L_out = L // pool_size
    out = out[:, :, :L_out * pool_size].reshape(N, C, L_out, pool_size).max(-1)
    return out.astype(x.dtype)


# ------------------------------------- test --------------------------------------

if __name__ == "__main__":
    def make_params(key, C, K):
        ks = jax.random.split(key, 12)

        def nrm(k, shape, s=0.1):
            return s * jax.random.normal(k, shape, dtype=jnp.float32)

        def uni(k, shape):
            return jax.random.uniform(k, shape, minval=0.5, maxval=1.5, dtype=jnp.float32)

        w1, b1 = nrm(ks[0], (C, C, K)), nrm(ks[1], (C,))
        g1, be1, m1, v1 = uni(ks[2], (C,)), nrm(ks[3], (C,)), nrm(ks[4], (C,)), uni(ks[5], (C,))
        w2, b2 = nrm(ks[6], (C, C, K)), nrm(ks[7], (C,))
        g2, be2, m2, v2 = uni(ks[8], (C,)), nrm(ks[9], (C,)), nrm(ks[10], (C,)), uni(ks[11], (C,))
        return (w1, b1, g1, be1, m1, v1, w2, b2, g2, be2, m2, v2)

    root = jax.random.PRNGKey(0)
    k_small, k_big = jax.random.split(root)

    # ---- small-C config (exercises the VPU small-channel path) ----
    N, C, L, K, P = 2, 4, 16, 3, 2
    kx, kp = jax.random.split(k_small)
    x = jax.random.normal(kx, (N, C, L), dtype=jnp.float32)
    params = make_params(kp, C, K)
    ref = resblock_ref(x, params, kernel_size=K, pool_size=P)

    out = resblock_forward(x, params, kernel_size=K, pool_size=P, compute_dtype=jnp.float32)
    out = jax.block_until_ready(out)
    assert out.shape == (N, C, L // P), out.shape
    assert jnp.allclose(out, ref, atol=1e-2, rtol=1e-2), float(jnp.max(jnp.abs(out - ref)))

    out_bf = resblock_forward(x, params, kernel_size=K, pool_size=P)   # default (bf16 operands)
    out_bf = jax.block_until_ready(out_bf)
    assert jnp.allclose(out_bf, ref, atol=8e-2, rtol=8e-2), float(jnp.max(jnp.abs(out_bf - ref)))

    # ---- larger-C config (exercises the MXU im2col + batch-packing path) ----
    N2, C2, L2, K2, P2 = 4, 64, 128, 3, 2
    kx2, kp2 = jax.random.split(k_big)
    x2 = jax.random.normal(kx2, (N2, C2, L2), dtype=jnp.float32)
    params2 = make_params(kp2, C2, K2)
    ref2 = resblock_ref(x2, params2, kernel_size=K2, pool_size=P2)

    out2 = resblock_forward(x2, params2, kernel_size=K2, pool_size=P2, compute_dtype=jnp.float32)
    out2 = jax.block_until_ready(out2)
    assert out2.shape == (N2, C2, L2 // P2), out2.shape
    assert jnp.allclose(out2, ref2, atol=1e-2, rtol=1e-2), float(jnp.max(jnp.abs(out2 - ref2)))

    out2_bf = resblock_forward(x2, params2, kernel_size=K2, pool_size=P2)  # bf16 MXU operands
    out2_bf = jax.block_until_ready(out2_bf)
    assert jnp.allclose(out2_bf, ref2, atol=8e-2, rtol=8e-2), float(jnp.max(jnp.abs(out2_bf - ref2)))

    print("KERNEL_OK")
</pallas_src>

<mosaic_0001>
module attributes {stable_mosaic.version = 11 : i64} {
  func.func @_resblock_vpu_kernel(%arg0: i32, %arg1: memref<1x4x16xf32, #tpu.memory_space<vmem>>, %arg2: memref<4x12xf32, #tpu.memory_space<vmem>>, %arg3: memref<4x1xf32, #tpu.memory_space<vmem>>, %arg4: memref<4x12xf32, #tpu.memory_space<vmem>>, %arg5: memref<4x1xf32, #tpu.memory_space<vmem>>, %arg6: memref<1x4x8xf32, #tpu.memory_space<vmem>>, %arg7: memref<4x16xf32, #tpu.memory_space<vmem>>) attributes {dimension_semantics = [#tpu.dimension_semantics<parallel>], iteration_bounds = array<i64: 2>, scalar_prefetch = 0 : i64, scratch_operands = 1 : i64, tpu.core_type = #tpu.core_type<tc>, window_params = [{transform_indices = @transform_0, window_bounds = array<i64: 1, 4, 16>}, {pipeline_mode = #tpu.pipeline_mode<synchronous>, transform_indices = @transform_1, window_bounds = array<i64: 4, 12>}, {pipeline_mode = #tpu.pipeline_mode<synchronous>, transform_indices = @transform_2, window_bounds = array<i64: 4, 1>}, {pipeline_mode = #tpu.pipeline_mode<synchronous>, transform_indices = @transform_3, window_bounds = array<i64: 4, 12>}, {pipeline_mode = #tpu.pipeline_mode<synchronous>, transform_indices = @transform_4, window_bounds = array<i64: 4, 1>}, {transform_indices = @transform_5, window_bounds = array<i64: 1, 4, 8>}]} {
    %0 = tpu.iota {dimensions = array<i32: 1>} : vector<1x16xi32>
    %c16_i32 = arith.constant 16 : i32
    %c0_i32 = arith.constant 0 : i32
    %1 = arith.cmpi eq, %c16_i32, %c0_i32 : i32
    %c1_i32 = arith.constant 1 : i32
    %2 = arith.select %1, %c1_i32, %c16_i32 : i32
    %3 = vector.broadcast %2 : i32 to vector<1x16xi32>
    %4 = arith.remsi %0, %3 : vector<1x16xi32>
    %c0_i32_0 = arith.constant 0 : i32
    %5 = vector.broadcast %c0_i32_0 : i32 to vector<1x16xi32>
    %6 = arith.cmpi ne, %4, %5 : vector<1x16xi32>
    %c0_i32_1 = arith.constant 0 : i32
    %7 = vector.broadcast %c0_i32_1 : i32 to vector<1x16xi32>
    %8 = arith.cmpi slt, %4, %7 : vector<1x16xi32>
    %c0_i32_2 = arith.constant 0 : i32
    %9 = arith.cmpi slt, %2, %c0_i32_2 : i32
    %10 = vector.broadcast %9 : i1 to vector<1x16xi1>
    %11 = vector.broadcast %10 : vector<1x16xi1> to vector<1x16xi1>
    %12 = arith.xori %8, %11 : vector<1x16xi1>
    %13 = arith.andi %12, %6 : vector<1x16xi1>
    %14 = vector.broadcast %2 : i32 to vector<1x16xi32>
    %15 = arith.addi %4, %14 : vector<1x16xi32>
    %16 = arith.select %13, %15, %4 : vector<1x16xi1>, vector<1x16xi32>
    %c-1_i32 = arith.constant -1 : i32
    %17 = vector.broadcast %c-1_i32 : i32 to vector<1x16xi32>
    %18 = arith.addi %16, %17 : vector<1x16xi32>
    %c0_i32_3 = arith.constant 0 : i32
    %19 = vector.broadcast %c0_i32_3 : i32 to vector<1x16xi32>
    %20 = arith.cmpi sge, %18, %19 : vector<1x16xi32>
    %c-1_i32_4 = arith.constant -1 : i32
    %21 = vector.broadcast %c-1_i32_4 : i32 to vector<1x16xi32>
    %22 = arith.addi %16, %21 : vector<1x16xi32>
    %c16_i32_5 = arith.constant 16 : i32
    %23 = vector.broadcast %c16_i32_5 : i32 to vector<1x16xi32>
    %24 = arith.cmpi slt, %22, %23 : vector<1x16xi32>
    %25 = arith.andi %20, %24 : vector<1x16xi1>
    %c1_i32_6 = arith.constant 1 : i32
    %26 = vector.broadcast %c1_i32_6 : i32 to vector<1x16xi32>
    %27 = arith.addi %16, %26 : vector<1x16xi32>
    %c0_i32_7 = arith.constant 0 : i32
    %28 = vector.broadcast %c0_i32_7 : i32 to vector<1x16xi32>
    %29 = arith.cmpi sge, %27, %28 : vector<1x16xi32>
    %c1_i32_8 = arith.constant 1 : i32
    %30 = vector.broadcast %c1_i32_8 : i32 to vector<1x16xi32>
    %31 = arith.addi %16, %30 : vector<1x16xi32>
    %c16_i32_9 = arith.constant 16 : i32
    %32 = vector.broadcast %c16_i32_9 : i32 to vector<1x16xi32>
    %33 = arith.cmpi slt, %31, %32 : vector<1x16xi32>
    %34 = arith.andi %29, %33 : vector<1x16xi1>
    %c0 = arith.constant 0 : index
    %c0_10 = arith.constant 0 : index
    %35 = vector.load %arg2[%c0, %c0_10] : memref<4x12xf32, #tpu.memory_space<vmem>>, vector<4x12xf32>
    %c0_11 = arith.constant 0 : index
    %c0_12 = arith.constant 0 : index
    %36 = vector.load %arg3[%c0_11, %c0_12] : memref<4x1xf32, #tpu.memory_space<vmem>>, vector<4x1xf32>
    %37 = vector.shape_cast %36 : vector<4x1xf32> to vector<4x1xf32>
    %38 = vector.broadcast %37 : vector<4x1xf32> to vector<4x16xf32>
    %c0_13 = arith.constant 0 : index
    %c0_14 = arith.constant 0 : index
    %c0_15 = arith.constant 0 : index
    %39 = vector.load %arg1[%c0_13, %c0_14, %c0_15] : memref<1x4x16xf32, #tpu.memory_space<vmem>>, vector<1x4x16xf32>
    %40 = vector.shape_cast %39 : vector<1x4x16xf32> to vector<4x16xf32>
    %41 = vector.extract_strided_slice %40 {offsets = [0, 15], sizes = [4, 1], strides = [1, 1]} : vector<4x16xf32> to vector<4x1xf32>
    %42 = vector.extract_strided_slice %40 {offsets = [0, 0], sizes = [4, 15], strides = [1, 1]} : vector<4x16xf32> to vector<4x15xf32>
    %43 = tpu.concatenate %41, %42 in 1 : vector<4x1xf32>, vector<4x15xf32> -> vector<4x16xf32>
    %cst = arith.constant 0.000000e+00 : f32
    %44 = vector.shape_cast %25 : vector<1x16xi1> to vector<1x16xi1>
    %45 = vector.broadcast %44 : vector<1x16xi1> to vector<4x16xi1>
    %46 = vector.broadcast %cst : f32 to vector<4x16xf32>
    %47 = arith.select %45, %43, %46 : vector<4x16xi1>, vector<4x16xf32>
    %48 = vector.extract_strided_slice %35 {offsets = [0, 0], sizes = [4, 1], strides = [1, 1]} : vector<4x12xf32> to vector<4x1xf32>
    %49 = vector.extract_strided_slice %47 {offsets = [0, 0], sizes = [1, 16], strides = [1, 1]} : vector<4x16xf32> to vector<1x16xf32>
    %50 = vector.broadcast %48 : vector<4x1xf32> to vector<4x16xf32>
    %51 = vector.broadcast %49 : vector<1x16xf32> to vector<4x16xf32>
    %52 = arith.mulf %50, %51 : vector<4x16xf32>
    %53 = arith.addf %38, %52 : vector<4x16xf32>
    %54 = vector.extract_strided_slice %35 {offsets = [0, 1], sizes = [4, 1], strides = [1, 1]} : vector<4x12xf32> to vector<4x1xf32>
    %55 = vector.extract_strided_slice %47 {offsets = [1, 0], sizes = [1, 16], strides = [1, 1]} : vector<4x16xf32> to vector<1x16xf32>
    %56 = vector.broadcast %54 : vector<4x1xf32> to vector<4x16xf32>
    %57 = vector.broadcast %55 : vector<1x16xf32> to vector<4x16xf32>
    %58 = arith.mulf %56, %57 : vector<4x16xf32>
    %59 = arith.addf %53, %58 : vector<4x16xf32>
    %60 = vector.extract_strided_slice %35 {offsets = [0, 2], sizes = [4, 1], strides = [1, 1]} : vector<4x12xf32> to vector<4x1xf32>
    %61 = vector.extract_strided_slice %47 {offsets = [2, 0], sizes = [1, 16], strides = [1, 1]} : vector<4x16xf32> to vector<1x16xf32>
    %62 = vector.broadcast %60 : vector<4x1xf32> to vector<4x16xf32>
    %63 = vector.broadcast %61 : vector<1x16xf32> to vector<4x16xf32>
    %64 = arith.mulf %62, %63 : vector<4x16xf32>
    %65 = arith.addf %59, %64 : vector<4x16xf32>
    %66 = vector.extract_strided_slice %35 {offsets = [0, 3], sizes = [4, 1], strides = [1, 1]} : vector<4x12xf32> to vector<4x1xf32>
    %67 = vector.extract_strided_slice %47 {offsets = [3, 0], sizes = [1, 16], strides = [1, 1]} : vector<4x16xf32> to vector<1x16xf32>
    %68 = vector.broadcast %66 : vector<4x1xf32> to vector<4x16xf32>
    %69 = vector.broadcast %67 : vector<1x16xf32> to vector<4x16xf32>
    %70 = arith.mulf %68, %69 : vector<4x16xf32>
    %71 = arith.addf %65, %70 : vector<4x16xf32>
    %c0_16 = arith.constant 0 : index
    %c0_17 = arith.constant 0 : index
    %c0_18 = arith.constant 0 : index
    %72 = vector.load %arg1[%c0_16, %c0_17, %c0_18] : memref<1x4x16xf32, #tpu.memory_space<vmem>>, vector<1x4x16xf32>
    %73 = vector.shape_cast %72 : vector<1x4x16xf32> to vector<4x16xf32>
    %74 = vector.extract_strided_slice %35 {offsets = [0, 4], sizes = [4, 1], strides = [1, 1]} : vector<4x12xf32> to vector<4x1xf32>
    %75 = vector.extract_strided_slice %73 {offsets = [0, 0], sizes = [1, 16], strides = [1, 1]} : vector<4x16xf32> to vector<1x16xf32>
    %76 = vector.broadcast %74 : vector<4x1xf32> to vector<4x16xf32>
    %77 = vector.broadcast %75 : vector<1x16xf32> to vector<4x16xf32>
    %78 = arith.mulf %76, %77 : vector<4x16xf32>
    %79 = arith.addf %71, %78 : vector<4x16xf32>
    %80 = vector.extract_strided_slice %35 {offsets = [0, 5], sizes = [4, 1], strides = [1, 1]} : vector<4x12xf32> to vector<4x1xf32>
    %81 = vector.extract_strided_slice %73 {offsets = [1, 0], sizes = [1, 16], strides = [1, 1]} : vector<4x16xf32> to vector<1x16xf32>
    %82 = vector.broadcast %80 : vector<4x1xf32> to vector<4x16xf32>
    %83 = vector.broadcast %81 : vector<1x16xf32> to vector<4x16xf32>
    %84 = arith.mulf %82, %83 : vector<4x16xf32>
    %85 = arith.addf %79, %84 : vector<4x16xf32>
    %86 = vector.extract_strided_slice %35 {offsets = [0, 6], sizes = [4, 1], strides = [1, 1]} : vector<4x12xf32> to vector<4x1xf32>
    %87 = vector.extract_strided_slice %73 {offsets = [2, 0], sizes = [1, 16], strides = [1, 1]} : vector<4x16xf32> to vector<1x16xf32>
    %88 = vector.broadcast %86 : vector<4x1xf32> to vector<4x16xf32>
    %89 = vector.broadcast %87 : vector<1x16xf32> to vector<4x16xf32>
    %90 = arith.mulf %88, %89 : vector<4x16xf32>
    %91 = arith.addf %85, %90 : vector<4x16xf32>
    %92 = vector.extract_strided_slice %35 {offsets = [0, 7], sizes = [4, 1], strides = [1, 1]} : vector<4x12xf32> to vector<4x1xf32>
    %93 = vector.extract_strided_slice %73 {offsets = [3, 0], sizes = [1, 16], strides = [1, 1]} : vector<4x16xf32> to vector<1x16xf32>
    %94 = vector.broadcast %92 : vector<4x1xf32> to vector<4x16xf32>
    %95 = vector.broadcast %93 : vector<1x16xf32> to vector<4x16xf32>
    %96 = arith.mulf %94, %95 : vector<4x16xf32>
    %97 = arith.addf %91, %96 : vector<4x16xf32>
    %c0_19 = arith.constant 0 : index
    %c0_20 = arith.constant 0 : index
    %c0_21 = arith.constant 0 : index
    %98 = vector.load %arg1[%c0_19, %c0_20, %c0_21] : memref<1x4x16xf32, #tpu.memory_space<vmem>>, vector<1x4x16xf32>
    %99 = vector.shape_cast %98 : vector<1x4x16xf32> to vector<4x16xf32>
    %100 = vector.extract_strided_slice %99 {offsets = [0, 1], sizes = [4, 15], strides = [1, 1]} : vector<4x16xf32> to vector<4x15xf32>
    %101 = vector.extract_strided_slice %99 {offsets = [0, 0], sizes = [4, 1], strides = [1, 1]} : vector<4x16xf32> to vector<4x1xf32>
    %102 = tpu.concatenate %100, %101 in 1 : vector<4x15xf32>, vector<4x1xf32> -> vector<4x16xf32>
    %cst_22 = arith.constant 0.000000e+00 : f32
    %103 = vector.shape_cast %34 : vector<1x16xi1> to vector<1x16xi1>
    %104 = vector.broadcast %103 : vector<1x16xi1> to vector<4x16xi1>
    %105 = vector.broadcast %cst_22 : f32 to vector<4x16xf32>
    %106 = arith.select %104, %102, %105 : vector<4x16xi1>, vector<4x16xf32>
    %107 = vector.extract_strided_slice %35 {offsets = [0, 8], sizes = [4, 1], strides = [1, 1]} : vector<4x12xf32> to vector<4x1xf32>
    %108 = vector.extract_strided_slice %106 {offsets = [0, 0], sizes = [1, 16], strides = [1, 1]} : vector<4x16xf32> to vector<1x16xf32>
    %109 = vector.broadcast %107 : vector<4x1xf32> to vector<4x16xf32>
    %110 = vector.broadcast %108 : vector<1x16xf32> to vector<4x16xf32>
    %111 = arith.mulf %109, %110 : vector<4x16xf32>
    %112 = arith.addf %97, %111 : vector<4x16xf32>
    %113 = vector.extract_strided_slice %35 {offsets = [0, 9], sizes = [4, 1], strides = [1, 1]} : vector<4x12xf32> to vector<4x1xf32>
    %114 = vector.extract_strided_slice %106 {offsets = [1, 0], sizes = [1, 16], strides = [1, 1]} : vector<4x16xf32> to vector<1x16xf32>
    %115 = vector.broadcast %113 : vector<4x1xf32> to vector<4x16xf32>
    %116 = vector.broadcast %114 : vector<1x16xf32> to vector<4x16xf32>
    %117 = arith.mulf %115, %116 : vector<4x16xf32>
    %118 = arith.addf %112, %117 : vector<4x16xf32>
    %119 = vector.extract_strided_slice %35 {offsets = [0, 10], sizes = [4, 1], strides = [1, 1]} : vector<4x12xf32> to vector<4x1xf32>
    %120 = vector.extract_strided_slice %106 {offsets = [2, 0], sizes = [1, 16], strides = [1, 1]} : vector<4x16xf32> to vector<1x16xf32>
    %121 = vector.broadcast %119 : vector<4x1xf32> to vector<4x16xf32>
    %122 = vector.broadcast %120 : vector<1x16xf32> to vector<4x16xf32>
    %123 = arith.mulf %121, %122 : vector<4x16xf32>
    %124 = arith.addf %118, %123 : vector<4x16xf32>
    %125 = vector.extract_strided_slice %35 {offsets = [0, 11], sizes = [4, 1], strides = [1, 1]} : vector<4x12xf32> to vector<4x1xf32>
    %126 = vector.extract_strided_slice %106 {offsets = [3, 0], sizes = [1, 16], strides = [1, 1]} : vector<4x16xf32> to vector<1x16xf32>
    %127 = vector.broadcast %125 : vector<4x1xf32> to vector<4x16xf32>
    %128 = vector.broadcast %126 : vector<1x16xf32> to vector<4x16xf32>
    %129 = arith.mulf %127, %128 : vector<4x16xf32>
    %130 = arith.addf %124, %129 : vector<4x16xf32>
    %cst_23 = arith.constant 0.000000e+00 : f32
    %131 = vector.broadcast %cst_23 : f32 to vector<4x16xf32>
    %132 = arith.maximumf %130, %131 : vector<4x16xf32>
    %c0_24 = arith.constant 0 : index
    %c0_25 = arith.constant 0 : index
    %133 = vector.load %arg7[%c0_24, %c0_25] : memref<4x16xf32, #tpu.memory_space<vmem>>, vector<4x16xf32>
    tpu.vector_store %arg7[%c0_24, %c0_25], %132 {strides = array<i32>} : memref<4x16xf32, #tpu.memory_space<vmem>>, vector<4x16xf32>,
    %c0_26 = arith.constant 0 : index
    %c0_27 = arith.constant 0 : index
    %134 = vector.load %arg4[%c0_26, %c0_27] : memref<4x12xf32, #tpu.memory_space<vmem>>, vector<4x12xf32>
    %c0_28 = arith.constant 0 : index
    %c0_29 = arith.constant 0 : index
    %135 = vector.load %arg5[%c0_28, %c0_29] : memref<4x1xf32, #tpu.memory_space<vmem>>, vector<4x1xf32>
    %136 = vector.shape_cast %135 : vector<4x1xf32> to vector<4x1xf32>
    %137 = vector.broadcast %136 : vector<4x1xf32> to vector<4x16xf32>
    %c0_30 = arith.constant 0 : index
    %c0_31 = arith.constant 0 : index
    %138 = vector.load %arg7[%c0_30, %c0_31] : memref<4x16xf32, #tpu.memory_space<vmem>>, vector<4x16xf32>
    %139 = vector.extract_strided_slice %138 {offsets = [0, 15], sizes = [4, 1], strides = [1, 1]} : vector<4x16xf32> to vector<4x1xf32>
    %140 = vector.extract_strided_slice %138 {offsets = [0, 0], sizes = [4, 15], strides = [1, 1]} : vector<4x16xf32> to vector<4x15xf32>
    %141 = tpu.concatenate %139, %140 in 1 : vector<4x1xf32>, vector<4x15xf32> -> vector<4x16xf32>
    %cst_32 = arith.constant 0.000000e+00 : f32
    %142 = vector.shape_cast %25 : vector<1x16xi1> to vector<1x16xi1>
    %143 = vector.broadcast %142 : vector<1x16xi1> to vector<4x16xi1>
    %144 = vector.broadcast %cst_32 : f32 to vector<4x16xf32>
    %145 = arith.select %143, %141, %144 : vector<4x16xi1>, vector<4x16xf32>
    %146 = vector.extract_strided_slice %134 {offsets = [0, 0], sizes = [4, 1], strides = [1, 1]} : vector<4x12xf32> to vector<4x1xf32>
    %147 = vector.extract_strided_slice %145 {offsets = [0, 0], sizes = [1, 16], strides = [1, 1]} : vector<4x16xf32> to vector<1x16xf32>
    %148 = vector.broadcast %146 : vector<4x1xf32> to vector<4x16xf32>
    %149 = vector.broadcast %147 : vector<1x16xf32> to vector<4x16xf32>
    %150 = arith.mulf %148, %149 : vector<4x16xf32>
    %151 = arith.addf %137, %150 : vector<4x16xf32>
    %152 = vector.extract_strided_slice %134 {offsets = [0, 1], sizes = [4, 1], strides = [1, 1]} : vector<4x12xf32> to vector<4x1xf32>
    %153 = vector.extract_strided_slice %145 {offsets = [1, 0], sizes = [1, 16], strides = [1, 1]} : vector<4x16xf32> to vector<1x16xf32>
    %154 = vector.broadcast %152 : vector<4x1xf32> to vector<4x16xf32>
    %155 = vector.broadcast %153 : vector<1x16xf32> to vector<4x16xf32>
    %156 = arith.mulf %154, %155 : vector<4x16xf32>
    %157 = arith.addf %151, %156 : vector<4x16xf32>
    %158 = vector.extract_strided_slice %134 {offsets = [0, 2], sizes = [4, 1], strides = [1, 1]} : vector<4x12xf32> to vector<4x1xf32>
    %159 = vector.extract_strided_slice %145 {offsets = [2, 0], sizes = [1, 16], strides = [1, 1]} : vector<4x16xf32> to vector<1x16xf32>
    %160 = vector.broadcast %158 : vector<4x1xf32> to vector<4x16xf32>
    %161 = vector.broadcast %159 : vector<1x16xf32> to vector<4x16xf32>
    %162 = arith.mulf %160, %161 : vector<4x16xf32>
    %163 = arith.addf %157, %162 : vector<4x16xf32>
    %164 = vector.extract_strided_slice %134 {offsets = [0, 3], sizes = [4, 1], strides = [1, 1]} : vector<4x12xf32> to vector<4x1xf32>
    %165 = vector.extract_strided_slice %145 {offsets = [3, 0], sizes = [1, 16], strides = [1, 1]} : vector<4x16xf32> to vector<1x16xf32>
    %166 = vector.broadcast %164 : vector<4x1xf32> to vector<4x16xf32>
    %167 = vector.broadcast %165 : vector<1x16xf32> to vector<4x16xf32>
    %168 = arith.mulf %166, %167 : vector<4x16xf32>
    %169 = arith.addf %163, %168 : vector<4x16xf32>
    %c0_33 = arith.constant 0 : index
    %c0_34 = arith.constant 0 : index
    %170 = vector.load %arg7[%c0_33, %c0_34] : memref<4x16xf32, #tpu.memory_space<vmem>>, vector<4x16xf32>
    %171 = vector.extract_strided_slice %134 {offsets = [0, 4], sizes = [4, 1], strides = [1, 1]} : vector<4x12xf32> to vector<4x1xf32>
    %172 = vector.extract_strided_slice %170 {offsets = [0, 0], sizes = [1, 16], strides = [1, 1]} : vector<4x16xf32> to vector<1x16xf32>
    %173 = vector.broadcast %171 : vector<4x1xf32> to vector<4x16xf32>
    %174 = vector.broadcast %172 : vector<1x16xf32> to vector<4x16xf32>
    %175 = arith.mulf %173, %174 : vector<4x16xf32>
    %176 = arith.addf %169, %175 : vector<4x16xf32>
    %177 = vector.extract_strided_slice %134 {offsets = [0, 5], sizes = [4, 1], strides = [1, 1]} : vector<4x12xf32> to vector<4x1xf32>
    %178 = vector.extract_strided_slice %170 {offsets = [1, 0], sizes = [1, 16], strides = [1, 1]} : vector<4x16xf32> to vector<1x16xf32>
    %179 = vector.broadcast %177 : vector<4x1xf32> to vector<4x16xf32>
    %180 = vector.broadcast %178 : vector<1x16xf32> to vector<4x16xf32>
    %181 = arith.mulf %179, %180 : vector<4x16xf32>
    %182 = arith.addf %176, %181 : vector<4x16xf32>
    %183 = vector.extract_strided_slice %134 {offsets = [0, 6], sizes = [4, 1], strides = [1, 1]} : vector<4x12xf32> to vector<4x1xf32>
    %184 = vector.extract_strided_slice %170 {offsets = [2, 0], sizes = [1, 16], strides = [1, 1]} : vector<4x16xf32> to vector<1x16xf32>
    %185 = vector.broadcast %183 : vector<4x1xf32> to vector<4x16xf32>
    %186 = vector.broadcast %184 : vector<1x16xf32> to vector<4x16xf32>
    %187 = arith.mulf %185, %186 : vector<4x16xf32>
    %188 = arith.addf %182, %187 : vector<4x16xf32>
    %189 = vector.extract_strided_slice %134 {offsets = [0, 7], sizes = [4, 1], strides = [1, 1]} : vector<4x12xf32> to vector<4x1xf32>
    %190 = vector.extract_strided_slice %170 {offsets = [3, 0], sizes = [1, 16], strides = [1, 1]} : vector<4x16xf32> to vector<1x16xf32>
    %191 = vector.broadcast %189 : vector<4x1xf32> to vector<4x16xf32>
    %192 = vector.broadcast %190 : vector<1x16xf32> to vector<4x16xf32>
    %193 = arith.mulf %191, %192 : vector<4x16xf32>
    %194 = arith.addf %188, %193 : vector<4x16xf32>
    %c0_35 = arith.constant 0 : index
    %c0_36 = arith.constant 0 : index
    %195 = vector.load %arg7[%c0_35, %c0_36] : memref<4x16xf32, #tpu.memory_space<vmem>>, vector<4x16xf32>
    %196 = vector.extract_strided_slice %195 {offsets = [0, 1], sizes = [4, 15], strides = [1, 1]} : vector<4x16xf32> to vector<4x15xf32>
    %197 = vector.extract_strided_slice %195 {offsets = [0, 0], sizes = [4, 1], strides = [1, 1]} : vector<4x16xf32> to vector<4x1xf32>
    %198 = tpu.concatenate %196, %197 in 1 : vector<4x15xf32>, vector<4x1xf32> -> vector<4x16xf32>
    %cst_37 = arith.constant 0.000000e+00 : f32
    %199 = vector.shape_cast %34 : vector<1x16xi1> to vector<1x16xi1>
    %200 = vector.broadcast %199 : vector<1x16xi1> to vector<4x16xi1>
    %201 = vector.broadcast %cst_37 : f32 to vector<4x16xf32>
    %202 = arith.select %200, %198, %201 : vector<4x16xi1>, vector<4x16xf32>
    %203 = vector.extract_strided_slice %134 {offsets = [0, 8], sizes = [4, 1], strides = [1, 1]} : vector<4x12xf32> to vector<4x1xf32>
    %204 = vector.extract_strided_slice %202 {offsets = [0, 0], sizes = [1, 16], strides = [1, 1]} : vector<4x16xf32> to vector<1x16xf32>
    %205 = vector.broadcast %203 : vector<4x1xf32> to vector<4x16xf32>
    %206 = vector.broadcast %204 : vector<1x16xf32> to vector<4x16xf32>
    %207 = arith.mulf %205, %206 : vector<4x16xf32>
    %208 = arith.addf %194, %207 : vector<4x16xf32>
    %209 = vector.extract_strided_slice %134 {offsets = [0, 9], sizes = [4, 1], strides = [1, 1]} : vector<4x12xf32> to vector<4x1xf32>
    %210 = vector.extract_strided_slice %202 {offsets = [1, 0], sizes = [1, 16], strides = [1, 1]} : vector<4x16xf32> to vector<1x16xf32>
    %211 = vector.broadcast %209 : vector<4x1xf32> to vector<4x16xf32>
    %212 = vector.broadcast %210 : vector<1x16xf32> to vector<4x16xf32>
    %213 = arith.mulf %211, %212 : vector<4x16xf32>
    %214 = arith.addf %208, %213 : vector<4x16xf32>
    %215 = vector.extract_strided_slice %134 {offsets = [0, 10], sizes = [4, 1], strides = [1, 1]} : vector<4x12xf32> to vector<4x1xf32>
    %216 = vector.extract_strided_slice %202 {offsets = [2, 0], sizes = [1, 16], strides = [1, 1]} : vector<4x16xf32> to vector<1x16xf32>
    %217 = vector.broadcast %215 : vector<4x1xf32> to vector<4x16xf32>
    %218 = vector.broadcast %216 : vector<1x16xf32> to vector<4x16xf32>
    %219 = arith.mulf %217, %218 : vector<4x16xf32>
    %220 = arith.addf %214, %219 : vector<4x16xf32>
    %221 = vector.extract_strided_slice %134 {offsets = [0, 11], sizes = [4, 1], strides = [1, 1]} : vector<4x12xf32> to vector<4x1xf32>
    %222 = vector.extract_strided_slice %202 {offsets = [3, 0], sizes = [1, 16], strides = [1, 1]} : vector<4x16xf32> to vector<1x16xf32>
    %223 = vector.broadcast %221 : vector<4x1xf32> to vector<4x16xf32>
    %224 = vector.broadcast %222 : vector<1x16xf32> to vector<4x16xf32>
    %225 = arith.mulf %223, %224 : vector<4x16xf32>
    %226 = arith.addf %220, %225 : vector<4x16xf32>
    %c0_38 = arith.constant 0 : index
    %c0_39 = arith.constant 0 : index
    %c0_40 = arith.constant 0 : index
    %227 = vector.load %arg1[%c0_38, %c0_39, %c0_40] : memref<1x4x16xf32, #tpu.memory_space<vmem>>, vector<1x4x16xf32>
    %228 = vector.shape_cast %227 : vector<1x4x16xf32> to vector<4x16xf32>
    %229 = arith.addf %226, %228 : vector<4x16xf32>
    %cst_41 = arith.constant 0.000000e+00 : f32
    %230 = vector.broadcast %cst_41 : f32 to vector<4x16xf32>
    %231 = arith.maximumf %229, %230 : vector<4x16xf32>
    %c0_42 = arith.constant 0 : index
    %c0_43 = arith.constant 0 : index
    %232 = vector.load %arg7[%c0_42, %c0_43] : memref<4x16xf32, #tpu.memory_space<vmem>>, vector<4x16xf32>
    tpu.vector_store %arg7[%c0_42, %c0_43], %231 {strides = array<i32>} : memref<4x16xf32, #tpu.memory_space<vmem>>, vector<4x16xf32>,
    %c0_44 = arith.constant 0 : index
    %c0_45 = arith.constant 0 : index
    %233 = vector.load %arg7[%c0_44, %c0_45] : memref<4x16xf32, #tpu.memory_space<vmem>>, vector<4x16xf32>
    %234 = vector.shape_cast %233 : vector<4x16xf32> to vector<4x8x2xf32>
    %cst_46 = arith.constant dense<0xFF800000> : vector<4x8xf32>
    %235 = vector.multi_reduction <maximumf>, %234, %cst_46 [2] : vector<4x8x2xf32> to vector<4x8xf32>
    %c0_47 = arith.constant 0 : index
    %c0_48 = arith.constant 0 : index
    %c0_49 = arith.constant 0 : index
    %236 = vector.load %arg6[%c0_47, %c0_48, %c0_49] : memref<1x4x8xf32, #tpu.memory_space<vmem>>, vector<1x4x8xf32>
    %237 = vector.shape_cast %236 : vector<1x4x8xf32> to vector<4x8xf32>
    %238 = vector.shape_cast %235 : vector<4x8xf32> to vector<1x4x8xf32>
    tpu.vector_store %arg6[%c0_47, %c0_48, %c0_49], %238 {strides = array<i32>} : memref<1x4x8xf32, #tpu.memory_space<vmem>>, vector<1x4x8xf32>,
    return
  }
  func.func @transform_0(%arg0: i32) -> (i32, i32, i32) {
    %c0_i32 = arith.constant 0 : i32
    %c0_i32_0 = arith.constant 0 : i32
    %c0_i32_1 = arith.constant 0 : i32
    return %arg0, %c0_i32, %c0_i32_0 : i32, i32, i32
  }
  func.func @transform_1(%arg0: i32) -> (i32, i32) {
    %c0_i32 = arith.constant 0 : i32
    %c0_i32_0 = arith.constant 0 : i32
    %c0_i32_1 = arith.constant 0 : i32
    return %c0_i32, %c0_i32_0 : i32, i32
  }
  func.func @transform_2(%arg0: i32) -> (i32, i32) {
    %c0_i32 = arith.constant 0 : i32
    %c0_i32_0 = arith.constant 0 : i32
    %c0_i32_1 = arith.constant 0 : i32
    return %c0_i32, %c0_i32_0 : i32, i32
  }
  func.func @transform_3(%arg0: i32) -> (i32, i32) {
    %c0_i32 = arith.constant 0 : i32
    %c0_i32_0 = arith.constant 0 : i32
    %c0_i32_1 = arith.constant 0 : i32
    return %c0_i32, %c0_i32_0 : i32, i32
  }
  func.func @transform_4(%arg0: i32) -> (i32, i32) {
    %c0_i32 = arith.constant 0 : i32
    %c0_i32_0 = arith.constant 0 : i32
    %c0_i32_1 = arith.constant 0 : i32
    return %c0_i32, %c0_i32_0 : i32, i32
  }
  func.func @transform_5(%arg0: i32) -> (i32, i32, i32) {
    %c0_i32 = arith.constant 0 : i32
    %c0_i32_0 = arith.constant 0 : i32
    %c0_i32_1 = arith.constant 0 : i32
    return %arg0, %c0_i32, %c0_i32_0 : i32, i32, i32
  }
}

</mosaic_0001>

<llo_original>
// kernel: tpu_custom_call.1
$region0: #{tpu_custom_call.1}
  #allocation0 [shape = 'u32[]', space=smem, size = 0x4, offset = 0x4, fixed_abs, tag = 'smem constant byte address 0x4 - core index']
  #allocation1 [shape = 'u32[72,128]{1,0:T(1,128)}', space=vmem, size = 0x9000, scoped, tag = 'internal scratch']
  #allocation2 [shape = 'f32[4,16]{1,0:T(4,128)}', space=vmem, size = 0x800, scoped, tag = 'scratch operand']
  %s0 = inlined_call_operand.vmem [shape: f32[2,4,16], index: 0, kind: input, shape index: {}]
  %s1 = inlined_call_operand.hbm [shape: f32[4,12], index: 1, kind: input, shape index: {}]
  %s2 = inlined_call_operand.vmem [shape: f32[4,1], index: 2, kind: input, shape index: {}]
  %s3 = inlined_call_operand.hbm [shape: f32[4,12], index: 3, kind: input, shape index: {}]
  %s4 = inlined_call_operand.vmem [shape: f32[4,1], index: 4, kind: input, shape index: {}]
  %s5 = inlined_call_operand.hbm [shape: f32[2,4,8], index: 5, kind: output, shape index: {}]
  %s6 = sld [smem:[#allocation0]]
  $region61: #{tpu_custom_call.1} parent=0
    _
  %s8 = ssub.s32 1, %s6
  %s9 = scalar_select 0, %s8, %s6
  $region1: #{tpu_custom_call.1} parent=0
    #allocation3 [shape = 'u8[2048]{0}', space=vmem, size = 0x800, scoped, tag = 'input window, operand 1, single buffered']
    #allocation4 [shape = 's32[2]{0}', space=sflag, size = 0x8, scoped, tag = 'scoped memory for tpu_custom_call.1']
    #allocation5 [shape = 's32[2]{0}', space=sflag, size = 0x8, scoped, tag = 'scoped memory for tpu_custom_call.1']
    #allocation6 [shape = 'u8[2048]{0}', space=vmem, size = 0x800, scoped, tag = 'input window, operand 3, single buffered']
    #allocation7 [shape = 's32[1]{0}', space=sflag, size = 0x4, scoped, tag = 'scoped memory for tpu_custom_call.1']
    #allocation8 [shape = 'u8[4096]{0}', space=vmem, size = 0x1000, scoped, tag = 'output window, operand 0']
    %10 = vsyncpa [#allocation4], 0
    %11 = vsyncpa [#allocation7], 0
    %12 = vsyncpa [#allocation5], 0
    %s13 = scalar_lea.sflag [#allocation5], 1
    %14 = vsyncpa %s13, 0
    loop: start=0, step=1, limit=4
    $region2: #{tpu_custom_call.1} parent=1 // loop_pre_header
      _
    $region3: #{tpu_custom_call.1} parent=1 // loop_header
      %s16 = sphi 0, %s20
      %p17 = scmp.ge.s32.totalorder %s16, 4
      %s26 = sphi 0, %s28
      %s29 = sphi 0, %s26
      %s30 = sphi 0, %s29
      %s46 = sphi 0, %s30
      %s50 = sphi 0, %s50
      %s52 = sphi 0, %s50
      %s53 = sphi 0, %s52
      %s67 = sphi 0, %s53
      %s71 = sphi 0, %s71
      %s73 = sphi 0, %s71
      %s74 = sphi 0, %s73
      %s88 = sphi 0, %s74
      %s92 = sphi 0, %s92
      %s94 = sphi 0, %s92
      %s95 = sphi 0, %s94
      %s109 = sphi 0, %s95
      %s113 = sphi 0, %s113
      %s115 = sphi 0, %s113
      %s116 = sphi 0, %s115
      %s130 = sphi 0, %s116
      %s136 = sphi 0, %s138
      %s139 = sphi 0, %s136
      %s140 = sphi 0, %s139
      %s156 = sphi 0, %s140
    $region4: #{tpu_custom_call.1} parent=1 // loop_header_branch
      %19 = sbr.rel (%p17) target = $region8
    $region5: #{tpu_custom_call.1} parent=1 // loop_body
      %s21 = ssub.s32 %s16, 1
      %s22 = ssub.s32 %s16, 2
      %s23 = sadd.s32 %s16, 1
      %s24 = ssub.s32 %s16, %s23
      %p25 = scmp.eq.s32.totalorder %s24, 0
      %s27 = sadd.s32 %s26, 1
      %s28 = scalar_select %p25, %s26, %s27
      %p31 = pneg %p25
      %p32 = scmp.eq.s32.totalorder %s16, 1
      %p33 = por %p31, %p32
      %p34 = scmp.ne.s32.totalorder %s26, %s29
      %p35 = scmp.eq.s32.totalorder %s16, 0
      %p36 = por %p34, %p35
      %p37 = scmp.ne.s32.totalorder %s26, %s29
      %p38 = scmp.eq.s32.totalorder %s21, 1
      %p39 = por %p37, %p38
      %p40 = scmp.ne.s32.totalorder %s29, %s30
      %p41 = scmp.eq.s32.totalorder %s21, 0
      %p42 = por %p40, %p41
      %p43 = scmp.ne.s32.totalorder %s29, %s30
      %p44 = scmp.eq.s32.totalorder %s22, 1
      %p45 = por %p43, %p44
      %p47 = scmp.ne.s32.totalorder %s30, %s46
      %p48 = scmp.eq.s32.totalorder %s22, 0
      %p49 = por %p47, %p48
      %s51 = sadd.s32 %s50, 1
      %p54 = scmp.eq.s32.totalorder %s16, 1
      %p55 = scmp.ne.s32.totalorder %s50, %s52
      %p56 = scmp.eq.s32.totalorder %s16, 0
      %p57 = por %p55, %p56
      %p58 = scmp.ne.s32.totalorder %s50, %s52
      %p59 = scmp.eq.s32.totalorder %s21, 1
      %p60 = por %p58, %p59
      %p61 = scmp.ne.s32.totalorder %s52, %s53
      %p62 = scmp.eq.s32.totalorder %s21, 0
      %p63 = por %p61, %p62
      %p64 = scmp.ne.s32.totalorder %s52, %s53
      %p65 = scmp.eq.s32.totalorder %s22, 1
      %p66 = por %p64, %p65
      %p68 = scmp.ne.s32.totalorder %s53, %s67
      %p69 = scmp.eq.s32.totalorder %s22, 0
      %p70 = por %p68, %p69
      %s72 = sadd.s32 %s71, 1
      %p75 = scmp.eq.s32.totalorder %s16, 1
      %p76 = scmp.ne.s32.totalorder %s71, %s73
      %p77 = scmp.eq.s32.totalorder %s16, 0
      %p78 = por %p76, %p77
      %p79 = scmp.ne.s32.totalorder %s71, %s73
      %p80 = scmp.eq.s32.totalorder %s21, 1
      %p81 = por %p79, %p80
      %p82 = scmp.ne.s32.totalorder %s73, %s74
      %p83 = scmp.eq.s32.totalorder %s21, 0
      %p84 = por %p82, %p83
      %p85 = scmp.ne.s32.totalorder %s73, %s74
      %p86 = scmp.eq.s32.totalorder %s22, 1
      %p87 = por %p85, %p86
      %p89 = scmp.ne.s32.totalorder %s74, %s88
      %p90 = scmp.eq.s32.totalorder %s22, 0
      %p91 = por %p89, %p90
      %s93 = sadd.s32 %s92, 1
      %p96 = scmp.eq.s32.totalorder %s16, 1
      %p97 = scmp.ne.s32.totalorder %s92, %s94
      %p98 = scmp.eq.s32.totalorder %s16, 0
      %p99 = por %p97, %p98
      %p100 = scmp.ne.s32.totalorder %s92, %s94
      %p101 = scmp.eq.s32.totalorder %s21, 1
      %p102 = por %p100, %p101
      %p103 = scmp.ne.s32.totalorder %s94, %s95
      %p104 = scmp.eq.s32.totalorder %s21, 0
      %p105 = por %p103, %p104
      %p106 = scmp.ne.s32.totalorder %s94, %s95
      %p107 = scmp.eq.s32.totalorder %s22, 1
      %p108 = por %p106, %p107
      %p110 = scmp.ne.s32.totalorder %s95, %s109
      %p111 = scmp.eq.s32.totalorder %s22, 0
      %p112 = por %p110, %p111
      %s114 = sadd.s32 %s113, 1
      %p117 = scmp.eq.s32.totalorder %s16, 1
      %p118 = scmp.ne.s32.totalorder %s113, %s115
      %p119 = scmp.eq.s32.totalorder %s16, 0
      %p120 = por %p118, %p119
      %p121 = scmp.ne.s32.totalorder %s113, %s115
      %p122 = scmp.eq.s32.totalorder %s21, 1
      %p123 = por %p121, %p122
      %p124 = scmp.ne.s32.totalorder %s115, %s116
      %p125 = scmp.eq.s32.totalorder %s21, 0
      %p126 = por %p124, %p125
      %p127 = scmp.ne.s32.totalorder %s115, %s116
      %p128 = scmp.eq.s32.totalorder %s22, 1
      %p129 = por %p127, %p128
      %p131 = scmp.ne.s32.totalorder %s116, %s130
      %p132 = scmp.eq.s32.totalorder %s22, 0
      %p133 = por %p131, %p132
      %s134 = ssub.s32 %s16, %s23
      %p135 = scmp.eq.s32.totalorder %s134, 0
      %s137 = sadd.s32 %s136, 1
      %s138 = scalar_select %p135, %s136, %s137
      %p141 = pneg %p135
      %p142 = scmp.eq.s32.totalorder %s16, 1
      %p143 = por %p141, %p142
      %p144 = scmp.ne.s32.totalorder %s136, %s139
      %p145 = scmp.eq.s32.totalorder %s16, 0
      %p146 = por %p144, %p145
      %p147 = scmp.ne.s32.totalorder %s136, %s139
      %p148 = scmp.eq.s32.totalorder %s21, 1
      %p149 = por %p147, %p148
      %p150 = scmp.ne.s32.totalorder %s139, %s140
      %p151 = scmp.eq.s32.totalorder %s21, 0
      %p152 = por %p150, %p151
      %p153 = scmp.ne.s32.totalorder %s139, %s140
      %p154 = scmp.eq.s32.totalorder %s22, 1
      %p155 = por %p153, %p154
      %p157 = scmp.ne.s32.totalorder %s140, %s156
      %p158 = scmp.eq.s32.totalorder %s22, 0
      %p159 = por %p157, %p158
      %p160 = scmp.le.s32.totalorder 1, %s16
      %p161 = scmp.lt.s32.totalorder %s16, 3
      %p162 = pnand %p160, %p161
      %p163 = pneg %p162
      // Predicated region
      $region9: #{tpu_custom_call.1} parent=5 // pred_check
        _
      $region10: #{tpu_custom_call.1} parent=5 // pred_check_branch
        %165 = sbr.rel (%p162) target = $region12
      $region11: #{tpu_custom_call.1} parent=5 // pred_region
        %s166 = ssub.s32 %s16, 1
        // Predicated region
        $region13: #{tpu_custom_call.1} parent=11 // pred_check
          %p167 = pneg %p63
        $region14: #{tpu_custom_call.1} parent=11 // pred_check_branch
          %169 = sbr.rel (%p167) target = $region16
        $region15: #{tpu_custom_call.1} parent=11 // pred_region
          %171 = vsyncadd [#allocation4], 0
          %s173 = sshll.u32 %s1, 4
          %s174 = int_to_ptr.hbm [resolvable:$true] %s173
          %s175 = sshll.u32 [#allocation3], 4
          %s176 = int_to_ptr.vmem [resolvable:$true] %s175
          %178 = dma.hbm_to_vmem [thread:$0]  %s174, 64, %s176, [#allocation4]
        $region16: #{tpu_custom_call.1} parent=11 // pred_fallthru
          _
        // Predicated region
        $region17: #{tpu_custom_call.1} parent=11 // pred_check
          %p179 = pneg %p84
        $region18: #{tpu_custom_call.1} parent=11 // pred_check_branch
          %181 = sbr.rel (%p179) target = $region20
        $region19: #{tpu_custom_call.1} parent=11 // pred_region
          _
        $region20: #{tpu_custom_call.1} parent=11 // pred_fallthru
          _
        // Predicated region
        $region21: #{tpu_custom_call.1} parent=11 // pred_check
          %p182 = pneg %p105
        $region22: #{tpu_custom_call.1} parent=11 // pred_check_branch
          %184 = sbr.rel (%p182) target = $region24
        $region23: #{tpu_custom_call.1} parent=11 // pred_region
          %186 = vsyncadd [#allocation7], 0
          %s188 = sshll.u32 %s3, 4
          %s189 = int_to_ptr.hbm [resolvable:$true] %s188
          %s190 = sshll.u32 [#allocation6], 4
          %s191 = int_to_ptr.vmem [resolvable:$true] %s190
          %193 = dma.hbm_to_vmem [thread:$0]  %s189, 64, %s191, [#allocation7]
        $region24: #{tpu_custom_call.1} parent=11 // pred_fallthru
          _
        // Predicated region
        $region25: #{tpu_custom_call.1} parent=11 // pred_check
          %p194 = pneg %p126
        $region26: #{tpu_custom_call.1} parent=11 // pred_check_branch
          %196 = sbr.rel (%p194) target = $region28
        $region27: #{tpu_custom_call.1} parent=11 // pred_region
          _
        $region28: #{tpu_custom_call.1} parent=11 // pred_fallthru
          _
      $region12: #{tpu_custom_call.1} parent=5 // pred_fallthru
        _
      %p197 = scmp.lt.s32.totalorder %s16, 2
      // Predicated region
      $region29: #{tpu_custom_call.1} parent=5 // pred_check
        %p198 = pneg %p197
      $region30: #{tpu_custom_call.1} parent=5 // pred_check_branch
        %200 = sbr.rel (%p198) target = $region32
      $region31: #{tpu_custom_call.1} parent=5 // pred_region
        // Predicated region
        $region33: #{tpu_custom_call.1} parent=31 // pred_check
          %p201 = pneg %p36
        $region34: #{tpu_custom_call.1} parent=31 // pred_check_branch
          %203 = sbr.rel (%p201) target = $region36
        $region35: #{tpu_custom_call.1} parent=31 // pred_region
          %p204 = scmp.lt.s32.totalorder %s16, 1
          %s205 = scalar_select %p204, %s16, 1
          %s206 = smul.addr %s205, 4
          %s207 = scalar_lea.vmem %s0, %s206
        $region36: #{tpu_custom_call.1} parent=31 // pred_fallthru
          _
      $region32: #{tpu_custom_call.1} parent=5 // pred_fallthru
        _
      %p208 = scmp.le.s32.totalorder 1, %s16
      %p209 = scmp.lt.s32.totalorder %s16, 3
      %p210 = pnand %p208, %p209
      %p211 = pneg %p210
      // Predicated region
      $region37: #{tpu_custom_call.1} parent=5 // pred_check
        _
      $region38: #{tpu_custom_call.1} parent=5 // pred_check_branch
        %213 = sbr.rel (%p210) target = $region40
      $region39: #{tpu_custom_call.1} parent=5 // pred_region
        %s214 = ssub.s32 %s16, 1
        // Predicated region
        $region41: #{tpu_custom_call.1} parent=39 // pred_check
          %p215 = pneg %p63
        $region42: #{tpu_custom_call.1} parent=39 // pred_check_branch
          %217 = sbr.rel (%p215) target = $region44
        $region43: #{tpu_custom_call.1} parent=39 // pred_region
          %219 = dma.done [#allocation4], 64
        $region44: #{tpu_custom_call.1} parent=39 // pred_fallthru
          _
        // Predicated region
        $region45: #{tpu_custom_call.1} parent=39 // pred_check
          %p220 = pneg %p105
        $region46: #{tpu_custom_call.1} parent=39 // pred_check_branch
          %222 = sbr.rel (%p220) target = $region48
        $region47: #{tpu_custom_call.1} parent=39 // pred_region
          %224 = dma.done [#allocation7], 64
        $region48: #{tpu_custom_call.1} parent=39 // pred_fallthru
          _
        %p225 = scmp.lt.s32.totalorder %s21, 1
        %s226 = scalar_select %p225, %s21, 1
        %s227 = smul.addr %s226, 4
        %s228 = scalar_lea.vmem %s0, %s227
        %p229 = pneg %p42
        %p230 = pneg %p39
        %p231 = pneg %p63
        %p232 = pneg %p60
        %p233 = pneg %p84
        %p234 = pneg %p81
        %p235 = pneg %p105
        %p236 = pneg %p102
        %p237 = pneg %p126
        %p238 = pneg %p123
        %p239 = pneg %p152
        %p240 = pneg %p149
        %s241 = sand.u32 %s139, 1
        %s242 = scalar_lea.sflag [#allocation5], %s241
        %s243 = sand.u32 %s139, 1
        %s244 = smul.addr %s243, 4
        %s245 = scalar_lea.vmem [#allocation8], %s244
        %p246 = scmp.lt.s32.totalorder %s21, 1
        %s247 = scalar_select %p246, %s21, 1
        %s248 = smul.addr %s247, 4
        %s249 = scalar_lea.vmem %s0, %s248
        %v250 = vlaneseq
        %v251 = vand.u32 %v250, 127
        %vm252 = vcmp.lt.s32.totalorder %v251, 0
        %v253 = vsub.s32 0, %v251
        %v254 = vsel %vm252, %v253, %v251
        %v255 = vshrl.u32 %v254, 4
        %v256 = vand.u32 %v254, 15
        %v257 = vsub.s32 0, %v256
        %v258 = vsel %vm252, %v257, %v256
        %vm259 = vcmp.ne.s32.totalorder %v258, 0
        %vm260 = vcmp.lt.s32.totalorder %v258, 0
        %vm261 = vmand %vm260, %vm259
        %v262 = vadd.s32 %v258, 16
        %v263 = vsel %vm261, %v262, %v258
        %v264 = vadd.s32 %v263, 4294967295
        %vm265 = vcmp.ge.s32.totalorder %v264, 0
        %vm266 = vcmp.lt.s32.totalorder %v264, 16
        %vm267 = vmand %vm265, %vm266
        %v268 = vadd.s32 %v263, 1
        %vm269 = vcmp.ge.s32.totalorder %v268, 0
        %vm270 = vcmp.lt.s32.totalorder %v268, 16
        %vm271 = vmand %vm269, %vm270
        %v272 = vld [vmem:[#allocation3] sm:$0xf]
        %v273 = vld [vmem:[%s2] sm:$0xf]
        %275 = vset.pattern.permute.xlu0 0
        %276 = vperm.xlu0 %275, %v273
        %v277 = vpop.permute.xlu0 %276
        %v279 = vld [vmem:[%s249] sm:$0xf]
        %281 = vrot.lane.b32.xlu0 %v279, 113
        %v282 = vpop.permute.xlu0 %281
        %284 = vrot.lane.b32.xlu0 %v279, 1
        %v285 = vpop.permute.xlu0 %284
        %vm287 = vcmask 7168
        %v288 = vsel %vm287, %v282, %v285
        %v289 = vsel %vm267, 1, 0
        %vm290 = vcmp.eq.s32.totalorder %v289, 1
        %v291 = vsel %vm290, %v288, 0.0
        %293 = vset.pattern.permute.xlu0 0
        %294 = vperm.xlu0 %293, %v272
        %v295 = vpop.permute.xlu0 %294
        %v297 = vperm.slane %v291, 0
        %v298 = vmul.f32 %v295, %v297
        %v299 = vadd.f32 %v277, %v298
        %300 = vset.pattern.permute.xlu0 1
        %301 = vperm.xlu0 %300, %v272
        %v302 = vpop.permute.xlu0 %301
        %v304 = vperm.slane %v291, 1
        %v305 = vmul.f32 %v302, %v304
        %v306 = vadd.f32 %v299, %v305
        %307 = vset.pattern.permute.xlu0 2
        %308 = vperm.xlu0 %307, %v272
        %v309 = vpop.permute.xlu0 %308
        %v311 = vperm.slane %v291, 2
        %v312 = vmul.f32 %v309, %v311
        %v313 = vadd.f32 %v306, %v312
        %314 = vset.pattern.permute.xlu0 3
        %315 = vperm.xlu0 %314, %v272
        %v316 = vpop.permute.xlu0 %315
        %v318 = vperm.slane %v291, 3
        %v319 = vmul.f32 %v316, %v318
        %v320 = vadd.f32 %v313, %v319
        %321 = vset.pattern.permute.xlu0 4
        %322 = vperm.xlu0 %321, %v272
        %v323 = vpop.permute.xlu0 %322
        %v325 = vperm.slane %v279, 0
        %v326 = vmul.f32 %v323, %v325
        %v327 = vadd.f32 %v320, %v326
        %328 = vset.pattern.permute.xlu0 5
        %329 = vperm.xlu0 %328, %v272
        %v330 = vpop.permute.xlu0 %329
        %v332 = vperm.slane %v279, 1
        %v333 = vmul.f32 %v330, %v332
        %v334 = vadd.f32 %v327, %v333
        %335 = vset.pattern.permute.xlu0 6
        %336 = vperm.xlu0 %335, %v272
        %v337 = vpop.permute.xlu0 %336
        %v339 = vperm.slane %v279, 2
        %v340 = vmul.f32 %v337, %v339
        %v341 = vadd.f32 %v334, %v340
        %342 = vset.pattern.permute.xlu0 7
        %343 = vperm.xlu0 %342, %v272
        %v344 = vpop.permute.xlu0 %343
        %v346 = vperm.slane %v279, 3
        %v347 = vmul.f32 %v344, %v346
        %v348 = vadd.f32 %v341, %v347
        %349 = vrot.lane.b32.xlu0 %v279, 127
        %v350 = vpop.permute.xlu0 %349
        %352 = vrot.lane.b32.xlu0 %v279, 15
        %v353 = vpop.permute.xlu0 %352
        %vm355 = vcmask 121856
        %v356 = vsel %vm355, %v350, %v353
        %v357 = vsel %vm271, 1, 0
        %vm358 = vcmp.eq.s32.totalorder %v357, 1
        %v359 = vsel %vm358, %v356, 0.0
        %360 = vset.pattern.permute.xlu0 8
        %361 = vperm.xlu0 %360, %v272
        %v362 = vpop.permute.xlu0 %361
        %v364 = vperm.slane %v359, 0
        %v365 = vmul.f32 %v362, %v364
        %v366 = vadd.f32 %v348, %v365
        %367 = vset.pattern.permute.xlu0 9
        %368 = vperm.xlu0 %367, %v272
        %v369 = vpop.permute.xlu0 %368
        %v371 = vperm.slane %v359, 1
        %v372 = vmul.f32 %v369, %v371
        %v373 = vadd.f32 %v366, %v372
        %374 = vset.pattern.permute.xlu0 10
        %375 = vperm.xlu0 %374, %v272
        %v376 = vpop.permute.xlu0 %375
        %v378 = vperm.slane %v359, 2
        %v379 = vmul.f32 %v376, %v378
        %v380 = vadd.f32 %v373, %v379
        %381 = vset.pattern.permute.xlu0 11
        %382 = vperm.xlu0 %381, %v272
        %v383 = vpop.permute.xlu0 %382
        %v385 = vperm.slane %v359, 3
        %v386 = vmul.f32 %v383, %v385
        %v387 = vadd.f32 %v380, %v386
        %v388 = vmax.f32 %v387, 0.0
        %vm389 = vcmask 125952
        %390 = vst.msk [vmem:[#allocation2] sm:$0xf] %vm389, %v388
        %v391 = vld [vmem:[#allocation6] sm:$0xf]
        %v392 = vld [vmem:[%s4] sm:$0xf]
        %394 = vset.pattern.permute.xlu0 0
        %395 = vperm.xlu0 %394, %v392
        %v396 = vpop.permute.xlu0 %395
        %v398 = vld [vmem:[#allocation2] sm:$0xf]
        %400 = vrot.lane.b32.xlu0 %v398, 113
        %v401 = vpop.permute.xlu0 %400
        %403 = vrot.lane.b32.xlu0 %v398, 1
        %v404 = vpop.permute.xlu0 %403
        %v406 = vsel %vm287, %v401, %v404
        %v407 = vsel %vm290, %v406, 0.0
        %409 = vset.pattern.permute.xlu0 0
        %410 = vperm.xlu0 %409, %v391
        %v411 = vpop.permute.xlu0 %410
        %v413 = vperm.slane %v407, 0
        %v414 = vmul.f32 %v411, %v413
        %v415 = vadd.f32 %v396, %v414
        %416 = vset.pattern.permute.xlu0 1
        %417 = vperm.xlu0 %416, %v391
        %v418 = vpop.permute.xlu0 %417
        %v420 = vperm.slane %v407, 1
        %v421 = vmul.f32 %v418, %v420
        %v422 = vadd.f32 %v415, %v421
        %423 = vset.pattern.permute.xlu0 2
        %424 = vperm.xlu0 %423, %v391
        %v425 = vpop.permute.xlu0 %424
        %v427 = vperm.slane %v407, 2
        %v428 = vmul.f32 %v425, %v427
        %v429 = vadd.f32 %v422, %v428
        %430 = vset.pattern.permute.xlu0 3
        %431 = vperm.xlu0 %430, %v391
        %v432 = vpop.permute.xlu0 %431
        %v434 = vperm.slane %v407, 3
        %v435 = vmul.f32 %v432, %v434
        %v436 = vadd.f32 %v429, %v435
        %437 = vset.pattern.permute.xlu0 4
        %438 = vperm.xlu0 %437, %v391
        %v439 = vpop.permute.xlu0 %438
        %v441 = vperm.slane %v398, 0
        %v442 = vmul.f32 %v439, %v441
        %v443 = vadd.f32 %v436, %v442
        %444 = vset.pattern.permute.xlu0 5
        %445 = vperm.xlu0 %444, %v391
        %v446 = vpop.permute.xlu0 %445
        %v448 = vperm.slane %v398, 1
        %v449 = vmul.f32 %v446, %v448
        %v450 = vadd.f32 %v443, %v449
        %451 = vset.pattern.permute.xlu0 6
        %452 = vperm.xlu0 %451, %v391
        %v453 = vpop.permute.xlu0 %452
        %v455 = vperm.slane %v398, 2
        %v456 = vmul.f32 %v453, %v455
        %v457 = vadd.f32 %v450, %v456
        %458 = vset.pattern.permute.xlu0 7
        %459 = vperm.xlu0 %458, %v391
        %v460 = vpop.permute.xlu0 %459
        %v462 = vperm.slane %v398, 3
        %v463 = vmul.f32 %v460, %v462
        %v464 = vadd.f32 %v457, %v463
        %465 = vrot.lane.b32.xlu0 %v398, 127
        %v466 = vpop.permute.xlu0 %465
        %468 = vrot.lane.b32.xlu0 %v398, 15
        %v469 = vpop.permute.xlu0 %468
        %v471 = vsel %vm355, %v466, %v469
        %v472 = vsel %vm358, %v471, 0.0
        %473 = vset.pattern.permute.xlu0 8
        %474 = vperm.xlu0 %473, %v391
        %v475 = vpop.permute.xlu0 %474
        %v477 = vperm.slane %v472, 0
        %v478 = vmul.f32 %v475, %v477
        %v479 = vadd.f32 %v464, %v478
        %480 = vset.pattern.permute.xlu0 9
        %481 = vperm.xlu0 %480, %v391
        %v482 = vpop.permute.xlu0 %481
        %v484 = vperm.slane %v472, 1
        %v485 = vmul.f32 %v482, %v484
        %v486 = vadd.f32 %v479, %v485
        %487 = vset.pattern.permute.xlu0 10
        %488 = vperm.xlu0 %487, %v391
        %v489 = vpop.permute.xlu0 %488
        %v491 = vperm.slane %v472, 2
        %v492 = vmul.f32 %v489, %v491
        %v493 = vadd.f32 %v486, %v492
        %494 = vset.pattern.permute.xlu0 11
        %495 = vperm.xlu0 %494, %v391
        %v496 = vpop.permute.xlu0 %495
        %v498 = vperm.slane %v472, 3
        %v499 = vmul.f32 %v496, %v498
        %v500 = vadd.f32 %v493, %v499
        %v501 = vld [vmem:[%s249] sm:$0xf]
        %v502 = vadd.f32 %v500, %v501
        %v503 = vmax.f32 %v502, 0.0
        %504 = vst.msk [vmem:[#allocation2] sm:$0xf] %vm389, %v503
        %v505 = vld [vmem:[#allocation2] sm:$0xf]
        %507 = vrot.lane.b32.xlu0 %v505, 126
        %v508 = vpop.permute.xlu0 %507
        %510 = vrot.lane.b32.xlu0 %v505, 124
        %v511 = vpop.permute.xlu0 %510
        %513 = vrot.lane.b32.xlu0 %v505, 122
        %v514 = vpop.permute.xlu0 %513
        %516 = vrot.lane.b32.xlu0 %v505, 120
        %v517 = vpop.permute.xlu0 %516
        %519 = vrot.lane.b32.xlu0 %v505, 118
        %v520 = vpop.permute.xlu0 %519
        %522 = vrot.lane.b32.xlu0 %v505, 116
        %v523 = vpop.permute.xlu0 %522
        %525 = vrot.lane.b32.xlu0 %v505, 114
        %v526 = vpop.permute.xlu0 %525
        %v528 = vrot.slane %v511, 4
        %vm529 = vcmask 1047556
        %v530 = vsel %vm529, %v528, %v505
        %v532 = vunpack.c.l.s4 1983009808
        %v533 = vunpack.c.0.s8 %v532
        %v534 = vperm.slane %v530, %v533
        %v535 = vrot.slane %v514, 4
        %v536 = vsel %vm529, %v535, %v508
        %v538 = vunpack.c.l.s4 1983009808
        %v539 = vunpack.c.0.s8 %v538
        %v540 = vperm.slane %v536, %v539
        %v541 = vrot.slane %v523, 4
        %v542 = vsel %vm529, %v541, %v517
        %v544 = vunpack.c.l.s4 1983009808
        %v545 = vunpack.c.0.s8 %v544
        %v546 = vperm.slane %v542, %v545
        %v547 = vrot.slane %v526, 4
        %v548 = vsel %vm529, %v547, %v520
        %v550 = vunpack.c.l.s4 1983009808
        %v551 = vunpack.c.0.s8 %v550
        %v552 = vperm.slane %v548, %v551
        %v553 = vrot.slane %v540, 4
        %v554 = vsel %vm529, %v553, %v534
        %v555 = vrot.slane %v534, 4
        %v556 = vsel %vm529, %v540, %v555
        %v558 = vunpack.c.l.s4 1934713408
        %v559 = vunpack.c.0.s8 %v558
        %v560 = vperm.slane %v554, %v559
        %v562 = vunpack.c.l.s4 1934713408
        %v563 = vunpack.c.0.s8 %v562
        %v564 = vperm.slane %v556, %v563
        %v565 = vrot.slane %v552, 4
        %v566 = vsel %vm529, %v565, %v546
        %v567 = vrot.slane %v546, 4
        %v568 = vsel %vm529, %v552, %v567
        %v570 = vunpack.c.l.s4 1934713408
        %v571 = vunpack.c.0.s8 %v570
        %v572 = vperm.slane %v566, %v571
        %v574 = vunpack.c.l.s4 1934713408
        %v575 = vunpack.c.0.s8 %v574
        %v576 = vperm.slane %v568, %v575
        %v577 = vrot.slane %v572, 4
        %v578 = vsel %vm529, %v577, %v560
        %v579 = vrot.slane %v560, 4
        %v580 = vsel %vm529, %v572, %v579
        %v581 = vrot.slane %v576, 4
        %v582 = vsel %vm529, %v581, %v564
        %v583 = vrot.slane %v564, 4
        %v584 = vsel %vm529, %v576, %v583
        %vm585 = vcmask 15360
        %v586 = vsel %vm585, %v578, -inf
        %587 = vmax.xlane.f32.xlu0 %v586
        %v588 = vpop.xlane.xlu0 %587
        %v589 = vsel %vm585, %v580, -inf
        %590 = vmax.xlane.f32.xlu0 %v589
        %v591 = vpop.xlane.xlu0 %590
        %v592 = vsel %vm585, %v582, -inf
        %593 = vmax.xlane.f32.xlu0 %v592
        %v594 = vpop.xlane.xlu0 %593
        %v595 = vsel %vm585, %v584, -inf
        %596 = vmax.xlane.f32.xlu0 %v595
        %v597 = vpop.xlane.xlu0 %596
        %v602 = vperm.slane %v588, %v251
        %v603 = vperm.slane %v591, %v251
        %v604 = vperm.slane %v594, %v251
        %v605 = vperm.slane %v597, %v251
        %vm606 = vcmask 1041409
        %v607 = vsel %vm606, %v603, %v602
        %vm608 = vcmask 1042434
        %v609 = vsel %vm608, %v604, %v607
        %vm610 = vcmask 1043459
        %v611 = vsel %vm610, %v605, %v609
        %vm613 = vcmask 60416
        %614 = vst.msk [vmem:[%s245] sm:$0xf] %vm613, %v611
        %s615 = sand.u32 %s139, 1
        %s616 = scalar_lea.sflag [#allocation5], %s615
        %s617 = sand.u32 %s139, 1
        %s618 = smul.addr %s617, 4
        %s619 = scalar_lea.vmem [#allocation8], %s618
        // Predicated region
        $region49: #{tpu_custom_call.1} parent=39 // pred_check
          %p620 = pneg %p149
        $region50: #{tpu_custom_call.1} parent=39 // pred_check_branch
          %622 = sbr.rel (%p620) target = $region52
        $region51: #{tpu_custom_call.1} parent=39 // pred_region
          %624 = vsyncadd %s616, 0
          %s625 = smul.addr %s21, 4
          %s626 = scalar_lea.hbm %s5, %s625
          %s628 = sshll.u32 %s619, 4
          %s629 = int_to_ptr.vmem [resolvable:$true] %s628
          %s630 = sshll.u32 %s626, 4
          %s631 = int_to_ptr.hbm [resolvable:$true] %s630
          %633 = dma.vmem_to_hbm [thread:$0]  %s629, 64, %s631, %s616
        $region52: #{tpu_custom_call.1} parent=39 // pred_fallthru
          _
      $region40: #{tpu_custom_call.1} parent=5 // pred_fallthru
        _
      %p634 = scmp.le.s32.totalorder 2, %s16
      // Predicated region
      $region53: #{tpu_custom_call.1} parent=5 // pred_check
        %p635 = pneg %p634
      $region54: #{tpu_custom_call.1} parent=5 // pred_check_branch
        %637 = sbr.rel (%p635) target = $region56
      $region55: #{tpu_custom_call.1} parent=5 // pred_region
        %s638 = ssub.s32 %s16, 2
        // Predicated region
        $region57: #{tpu_custom_call.1} parent=55 // pred_check
          %p639 = pneg %p155
        $region58: #{tpu_custom_call.1} parent=55 // pred_check_branch
          %641 = sbr.rel (%p639) target = $region60
        $region59: #{tpu_custom_call.1} parent=55 // pred_region
          %s642 = sand.u32 %s140, 1
          %s643 = scalar_lea.sflag [#allocation5], %s642
          %s644 = sand.u32 %s140, 1
          %s645 = smul.addr %s644, 4
          %s646 = scalar_lea.vmem [#allocation8], %s645
          %648 = dma.done %s643, 64
        $region60: #{tpu_custom_call.1} parent=55 // pred_fallthru
          _
      $region56: #{tpu_custom_call.1} parent=5 // pred_fallthru
        _
    $region6: #{tpu_custom_call.1} parent=1 // loop_footer
      %s20 = sadd.s32 1, %s16
    $region7: #{tpu_custom_call.1} parent=1 // loop_footer_branch
      %15 = sbr.rel target = $region3
    $region8: #{tpu_custom_call.1} parent=1 // loop_exit
      _
    %649 = vsyncpa [#allocation4], 1
    %s650 = scalar_lea.sflag [#allocation4], 1
    %651 = vsyncpa %s650, 1
    %652 = vsyncpa [#allocation7], 1
    %653 = vsyncpa [#allocation5], 1
    %s654 = scalar_lea.sflag [#allocation5], 1
    %655 = vsyncpa %s654, 1

</llo_original>
